<compile_context>
chip_gen: v7x
topology: tpu7x:2x2x1
jax: 0.10.0
libtpu: 0.0.40
codegen_flags: <defaults>
</compile_context>

<pallas_src>
import jax
import jax.numpy as jnp
from jax.experimental import pallas as pl
from jax.experimental.pallas import tpu as pltpu


_VMEM_SPEC = pl.BlockSpec(memory_space=pltpu.MemorySpace.VMEM)


# ----------------------------------------------------------------------------
# Pallas kernel (factory: unrolls over critics and layers at trace time)
# ----------------------------------------------------------------------------

def _make_qcritic_kernel(num_critics: int, num_linear: int):
    """Fused kernel evaluating every critic MLP in one call.

    Per-critic flattened param refs: [w1_obs, w1_act, b1, w2, b2, ..., wL, bL]
    (L = num_linear; ReLU after every linear except the last).
    """
    refs_per_critic = 3 + 2 * (num_linear - 1)

    def kernel(obs_ref, act_ref, *rest):
        out_ref = rest[-1]
        params = rest[:-1]
        obs = obs_ref[...]
        act = act_ref[...]
        for c in range(num_critics):
            p = params[c * refs_per_critic:(c + 1) * refs_per_critic]
            w1o, w1a, b1 = p[0], p[1], p[2]
            # First layer: split-K matmul replaces concat(obs, act) @ W1.
            h = (jnp.dot(obs, w1o[...], preferred_element_type=jnp.float32)
                 + jnp.dot(act, w1a[...], preferred_element_type=jnp.float32)
                 + b1[...])
            h = jnp.maximum(h, 0.0)
            idx = 3
            for layer in range(1, num_linear):
                w, b = p[idx], p[idx + 1]
                idx += 2
                h = jnp.dot(h, w[...], preferred_element_type=jnp.float32) + b[...]
                if layer < num_linear - 1:
                    h = jnp.maximum(h, 0.0)
            # h: (batch, 1) -> column c of the packed (batch, num_critics) output.
            out_ref[:, c:c + 1] = h.astype(out_ref.dtype)

    return kernel


# ----------------------------------------------------------------------------
# Parameter init (mirrors nn.Linear + kaiming_uniform_(a=sqrt(5)))
# ----------------------------------------------------------------------------

def _init_linear(key, fan_in, fan_out):
    # kaiming_uniform_(a=sqrt(5)) on an (out, in) weight -> bound = 1/sqrt(fan_in);
    # default nn.Linear bias init uses the same bound.
    kw, kb = jax.random.split(key)
    bound = 1.0 / jnp.sqrt(float(fan_in))
    w = jax.random.uniform(kw, (fan_in, fan_out), jnp.float32, -bound, bound)
    b = jax.random.uniform(kb, (1, fan_out), jnp.float32, -bound, bound)
    return w, b


class QCriticPallas:
    """Mirror of omnisafe's QCritic using one fused Pallas TPU kernel."""

    def __init__(self, obs_dim, act_dim, hidden_sizes, num_critics, key):
        self.obs_dim = obs_dim
        self.act_dim = act_dim
        self.num_critics = num_critics
        sizes = [obs_dim + act_dim, *hidden_sizes, 1]
        self.num_linear = len(sizes) - 1
        self.flat_params = []
        critic_keys = jax.random.split(key, num_critics)
        for c in range(num_critics):
            layer_keys = jax.random.split(critic_keys[c], self.num_linear)
            for j in range(self.num_linear):
                w, b = _init_linear(layer_keys[j], sizes[j], sizes[j + 1])
                if j == 0:
                    # Row-split the first-layer weight: obs rows / act rows.
                    self.flat_params += [w[:obs_dim], w[obs_dim:], b]
                else:
                    self.flat_params += [w, b]
        self._kernel = _make_qcritic_kernel(num_critics, self.num_linear)

    def forward(self, obs, act):
        batch = obs.shape[0]
        n_in = 2 + len(self.flat_params)
        q = pl.pallas_call(
            self._kernel,
            out_shape=jax.ShapeDtypeStruct((batch, self.num_critics), jnp.float32),
            in_specs=[_VMEM_SPEC] * n_in,
            out_specs=_VMEM_SPEC,
        )(obs, act, *self.flat_params)
        # torch.squeeze(..., -1) per critic -> list of (batch,) Q-values.
        return [q[:, c] for c in range(self.num_critics)]


# ----------------------------------------------------------------------------
# Pure-JAX reference (same params) for a correctness check
# ----------------------------------------------------------------------------

def _reference_forward(critic, obs, act):
    x = jnp.concatenate([obs, act], axis=-1)
    per = 3 + 2 * (critic.num_linear - 1)
    res = []
    for c in range(critic.num_critics):
        p = critic.flat_params[c * per:(c + 1) * per]
        w1 = jnp.concatenate([p[0], p[1]], axis=0)
        h = x @ w1 + p[2]
        h = jnp.maximum(h, 0.0)
        idx = 3
        for layer in range(1, critic.num_linear):
            h = h @ p[idx] + p[idx + 1]
            idx += 2
            if layer < critic.num_linear - 1:
                h = jnp.maximum(h, 0.0)
        res.append(h[:, 0])
    return res


# ----------------------------------------------------------------------------
# Main
# ----------------------------------------------------------------------------

if __name__ == "__main__":
    OBS_DIM = 16
    ACT_DIM = 8
    HIDDEN = [32, 32]
    BATCH = 4
    NUM_CRITICS = 2

    root = jax.random.PRNGKey(0)
    k_param, k_obs, k_act = jax.random.split(root, 3)

    critic = QCriticPallas(OBS_DIM, ACT_DIM, HIDDEN, NUM_CRITICS, k_param)

    obs = jax.random.normal(k_obs, (BATCH, OBS_DIM), jnp.float32)
    act = jax.random.normal(k_act, (BATCH, ACT_DIM), jnp.float32)

    q_list = critic.forward(obs, act)
    jax.block_until_ready(q_list)

    assert len(q_list) == NUM_CRITICS
    for q in q_list:
        assert q.shape == (BATCH,)
        assert bool(jnp.isfinite(q).all())

    q_ref = _reference_forward(critic, obs, act)
    for q, r in zip(q_list, q_ref):
        assert bool(jnp.allclose(q, r, atol=1e-5, rtol=1e-5))

    print("KERNEL_OK")
</pallas_src>

<mosaic_0001>
module attributes {stable_mosaic.version = 11 : i64} {
  func.func @kernel(%arg0: memref<4x16xf32, #tpu.memory_space<vmem>>, %arg1: memref<4x8xf32, #tpu.memory_space<vmem>>, %arg2: memref<16x32xf32, #tpu.memory_space<vmem>>, %arg3: memref<8x32xf32, #tpu.memory_space<vmem>>, %arg4: memref<1x32xf32, #tpu.memory_space<vmem>>, %arg5: memref<32x32xf32, #tpu.memory_space<vmem>>, %arg6: memref<1x32xf32, #tpu.memory_space<vmem>>, %arg7: memref<32x1xf32, #tpu.memory_space<vmem>>, %arg8: memref<1x1xf32, #tpu.memory_space<vmem>>, %arg9: memref<16x32xf32, #tpu.memory_space<vmem>>, %arg10: memref<8x32xf32, #tpu.memory_space<vmem>>, %arg11: memref<1x32xf32, #tpu.memory_space<vmem>>, %arg12: memref<32x32xf32, #tpu.memory_space<vmem>>, %arg13: memref<1x32xf32, #tpu.memory_space<vmem>>, %arg14: memref<32x1xf32, #tpu.memory_space<vmem>>, %arg15: memref<1x1xf32, #tpu.memory_space<vmem>>, %arg16: memref<4x2xf32, #tpu.memory_space<vmem>>) attributes {dimension_semantics = [], scalar_prefetch = 0 : i64, scratch_operands = 0 : i64, tpu.core_type = #tpu.core_type<tc>} {
    %c0 = arith.constant 0 : index
    %c0_0 = arith.constant 0 : index
    %0 = vector.load %arg0[%c0, %c0_0] : memref<4x16xf32, #tpu.memory_space<vmem>>, vector<4x16xf32>
    %c0_1 = arith.constant 0 : index
    %c0_2 = arith.constant 0 : index
    %1 = vector.load %arg1[%c0_1, %c0_2] : memref<4x8xf32, #tpu.memory_space<vmem>>, vector<4x8xf32>
    %c0_3 = arith.constant 0 : index
    %c0_4 = arith.constant 0 : index
    %2 = vector.load %arg2[%c0_3, %c0_4] : memref<16x32xf32, #tpu.memory_space<vmem>>, vector<16x32xf32>
    %cst = arith.constant dense<0.000000e+00> : vector<4x32xf32>
    %3 = tpu.matmul %0, %2, %cst {dimension_numbers = #tpu.dot_dimension_numbers<[1], [0], [0], [1], [0, 0, 1, 1], [], []>} : vector<4x16xf32>, vector<16x32xf32>, vector<4x32xf32> -> vector<4x32xf32>
    %c0_5 = arith.constant 0 : index
    %c0_6 = arith.constant 0 : index
    %4 = vector.load %arg3[%c0_5, %c0_6] : memref<8x32xf32, #tpu.memory_space<vmem>>, vector<8x32xf32>
    %cst_7 = arith.constant dense<0.000000e+00> : vector<4x32xf32>
    %5 = tpu.matmul %1, %4, %cst_7 {dimension_numbers = #tpu.dot_dimension_numbers<[1], [0], [0], [1], [0, 0, 1, 1], [], []>} : vector<4x8xf32>, vector<8x32xf32>, vector<4x32xf32> -> vector<4x32xf32>
    %6 = arith.addf %3, %5 : vector<4x32xf32>
    %c0_8 = arith.constant 0 : index
    %c0_9 = arith.constant 0 : index
    %7 = vector.load %arg4[%c0_8, %c0_9] : memref<1x32xf32, #tpu.memory_space<vmem>>, vector<1x32xf32>
    %8 = vector.broadcast %7 : vector<1x32xf32> to vector<4x32xf32>
    %9 = arith.addf %6, %8 : vector<4x32xf32>
    %cst_10 = arith.constant 0.000000e+00 : f32
    %10 = vector.broadcast %cst_10 : f32 to vector<4x32xf32>
    %11 = arith.maximumf %9, %10 : vector<4x32xf32>
    %c0_11 = arith.constant 0 : index
    %c0_12 = arith.constant 0 : index
    %12 = vector.load %arg5[%c0_11, %c0_12] : memref<32x32xf32, #tpu.memory_space<vmem>>, vector<32x32xf32>
    %cst_13 = arith.constant dense<0.000000e+00> : vector<4x32xf32>
    %13 = tpu.matmul %11, %12, %cst_13 {dimension_numbers = #tpu.dot_dimension_numbers<[1], [0], [0], [1], [0, 0, 1, 1], [], []>} : vector<4x32xf32>, vector<32x32xf32>, vector<4x32xf32> -> vector<4x32xf32>
    %c0_14 = arith.constant 0 : index
    %c0_15 = arith.constant 0 : index
    %14 = vector.load %arg6[%c0_14, %c0_15] : memref<1x32xf32, #tpu.memory_space<vmem>>, vector<1x32xf32>
    %15 = vector.broadcast %14 : vector<1x32xf32> to vector<4x32xf32>
    %16 = arith.addf %13, %15 : vector<4x32xf32>
    %cst_16 = arith.constant 0.000000e+00 : f32
    %17 = vector.broadcast %cst_16 : f32 to vector<4x32xf32>
    %18 = arith.maximumf %16, %17 : vector<4x32xf32>
    %c0_17 = arith.constant 0 : index
    %c0_18 = arith.constant 0 : index
    %19 = vector.load %arg7[%c0_17, %c0_18] : memref<32x1xf32, #tpu.memory_space<vmem>>, vector<32x1xf32>
    %cst_19 = arith.constant dense<0.000000e+00> : vector<4x1xf32>
    %20 = tpu.matmul %18, %19, %cst_19 {dimension_numbers = #tpu.dot_dimension_numbers<[1], [0], [0], [1], [0, 0, 1, 1], [], []>} : vector<4x32xf32>, vector<32x1xf32>, vector<4x1xf32> -> vector<4x1xf32>
    %c0_20 = arith.constant 0 : index
    %c0_21 = arith.constant 0 : index
    %21 = vector.load %arg8[%c0_20, %c0_21] : memref<1x1xf32, #tpu.memory_space<vmem>>, vector<1x1xf32>
    %22 = vector.broadcast %21 : vector<1x1xf32> to vector<4x1xf32>
    %23 = arith.addf %20, %22 : vector<4x1xf32>
    %c0_22 = arith.constant 0 : index
    %c0_23 = arith.constant 0 : index
    %24 = vector.load %arg16[%c0_22, %c0_23] : memref<4x2xf32, #tpu.memory_space<vmem>>, vector<4x1xf32>
    tpu.vector_store %arg16[%c0_22, %c0_23], %23 {strides = array<i32>} : memref<4x2xf32, #tpu.memory_space<vmem>>, vector<4x1xf32>,
    %c0_24 = arith.constant 0 : index
    %c0_25 = arith.constant 0 : index
    %25 = vector.load %arg9[%c0_24, %c0_25] : memref<16x32xf32, #tpu.memory_space<vmem>>, vector<16x32xf32>
    %cst_26 = arith.constant dense<0.000000e+00> : vector<4x32xf32>
    %26 = tpu.matmul %0, %25, %cst_26 {dimension_numbers = #tpu.dot_dimension_numbers<[1], [0], [0], [1], [0, 0, 1, 1], [], []>} : vector<4x16xf32>, vector<16x32xf32>, vector<4x32xf32> -> vector<4x32xf32>
    %c0_27 = arith.constant 0 : index
    %c0_28 = arith.constant 0 : index
    %27 = vector.load %arg10[%c0_27, %c0_28] : memref<8x32xf32, #tpu.memory_space<vmem>>, vector<8x32xf32>
    %cst_29 = arith.constant dense<0.000000e+00> : vector<4x32xf32>
    %28 = tpu.matmul %1, %27, %cst_29 {dimension_numbers = #tpu.dot_dimension_numbers<[1], [0], [0], [1], [0, 0, 1, 1], [], []>} : vector<4x8xf32>, vector<8x32xf32>, vector<4x32xf32> -> vector<4x32xf32>
    %29 = arith.addf %26, %28 : vector<4x32xf32>
    %c0_30 = arith.constant 0 : index
    %c0_31 = arith.constant 0 : index
    %30 = vector.load %arg11[%c0_30, %c0_31] : memref<1x32xf32, #tpu.memory_space<vmem>>, vector<1x32xf32>
    %31 = vector.broadcast %30 : vector<1x32xf32> to vector<4x32xf32>
    %32 = arith.addf %29, %31 : vector<4x32xf32>
    %cst_32 = arith.constant 0.000000e+00 : f32
    %33 = vector.broadcast %cst_32 : f32 to vector<4x32xf32>
    %34 = arith.maximumf %32, %33 : vector<4x32xf32>
    %c0_33 = arith.constant 0 : index
    %c0_34 = arith.constant 0 : index
    %35 = vector.load %arg12[%c0_33, %c0_34] : memref<32x32xf32, #tpu.memory_space<vmem>>, vector<32x32xf32>
    %cst_35 = arith.constant dense<0.000000e+00> : vector<4x32xf32>
    %36 = tpu.matmul %34, %35, %cst_35 {dimension_numbers = #tpu.dot_dimension_numbers<[1], [0], [0], [1], [0, 0, 1, 1], [], []>} : vector<4x32xf32>, vector<32x32xf32>, vector<4x32xf32> -> vector<4x32xf32>
    %c0_36 = arith.constant 0 : index
    %c0_37 = arith.constant 0 : index
    %37 = vector.load %arg13[%c0_36, %c0_37] : memref<1x32xf32, #tpu.memory_space<vmem>>, vector<1x32xf32>
    %38 = vector.broadcast %37 : vector<1x32xf32> to vector<4x32xf32>
    %39 = arith.addf %36, %38 : vector<4x32xf32>
    %cst_38 = arith.constant 0.000000e+00 : f32
    %40 = vector.broadcast %cst_38 : f32 to vector<4x32xf32>
    %41 = arith.maximumf %39, %40 : vector<4x32xf32>
    %c0_39 = arith.constant 0 : index
    %c0_40 = arith.constant 0 : index
    %42 = vector.load %arg14[%c0_39, %c0_40] : memref<32x1xf32, #tpu.memory_space<vmem>>, vector<32x1xf32>
    %cst_41 = arith.constant dense<0.000000e+00> : vector<4x1xf32>
    %43 = tpu.matmul %41, %42, %cst_41 {dimension_numbers = #tpu.dot_dimension_numbers<[1], [0], [0], [1], [0, 0, 1, 1], [], []>} : vector<4x32xf32>, vector<32x1xf32>, vector<4x1xf32> -> vector<4x1xf32>
    %c0_42 = arith.constant 0 : index
    %c0_43 = arith.constant 0 : index
    %44 = vector.load %arg15[%c0_42, %c0_43] : memref<1x1xf32, #tpu.memory_space<vmem>>, vector<1x1xf32>
    %45 = vector.broadcast %44 : vector<1x1xf32> to vector<4x1xf32>
    %46 = arith.addf %43, %45 : vector<4x1xf32>
    %c0_44 = arith.constant 0 : index
    %c1 = arith.constant 1 : index
    %47 = vector.load %arg16[%c0_44, %c1] : memref<4x2xf32, #tpu.memory_space<vmem>>, vector<4x1xf32>
    tpu.vector_store %arg16[%c0_44, %c1], %46 {strides = array<i32>} : memref<4x2xf32, #tpu.memory_space<vmem>>, vector<4x1xf32>,
    return
  }
}

</mosaic_0001>

<llo_original>
// kernel: tpu_custom_call.1
$region0: #{tpu_custom_call.1}
  #allocation0 [shape = 'u32[]', space=smem, size = 0x4, offset = 0x4, fixed_abs, tag = 'smem constant byte address 0x4 - core index']
  #allocation1 [shape = 'u32[144,128]{1,0:T(1,128)}', space=vmem, size = 0x12000, scoped, tag = 'internal scratch']
  #allocation2 [shape = 'f32[1,1]{1,0:T(1,128)S(1)}', space=vmem, size = 0x200, scoped, tag = 'scoped memory for tpu_custom_call.1']
  #allocation3 [shape = 'f32[1,1]{1,0:T(1,128)S(1)}', space=vmem, size = 0x200, scoped, tag = 'scoped memory for tpu_custom_call.1']
  %s0 = inlined_call_operand.hbm [shape: f32[4,16], index: 0, kind: input, shape index: {}]
  %s1 = inlined_call_operand.hbm [shape: f32[4,8], index: 1, kind: input, shape index: {}]
  %s2 = inlined_call_operand.vmem [shape: f32[16,32], index: 2, kind: input, shape index: {}]
  %s3 = inlined_call_operand.hbm [shape: f32[8,32], index: 3, kind: input, shape index: {}]
  %s4 = inlined_call_operand.hbm [shape: f32[1,32], index: 4, kind: input, shape index: {}]
  %s5 = inlined_call_operand.vmem [shape: f32[32,32], index: 5, kind: input, shape index: {}]
  %s6 = inlined_call_operand.hbm [shape: f32[1,32], index: 6, kind: input, shape index: {}]
  %s7 = inlined_call_operand.vmem [shape: f32[32,1], index: 7, kind: input, shape index: {}]
  %s8 = inlined_call_operand.<no memory space> [shape: f32[1,1], index: 8, kind: input, shape index: {}]
  %s9 = inlined_call_operand.vmem [shape: f32[16,32], index: 9, kind: input, shape index: {}]
  %s10 = inlined_call_operand.vmem [shape: f32[8,32], index: 10, kind: input, shape index: {}]
  %s11 = inlined_call_operand.vmem [shape: f32[1,32], index: 11, kind: input, shape index: {}]
  %s12 = inlined_call_operand.vmem [shape: f32[32,32], index: 12, kind: input, shape index: {}]
  %s13 = inlined_call_operand.vmem [shape: f32[1,32], index: 13, kind: input, shape index: {}]
  %s14 = inlined_call_operand.vmem [shape: f32[32,1], index: 14, kind: input, shape index: {}]
  %s15 = inlined_call_operand.<no memory space> [shape: f32[1,1], index: 15, kind: input, shape index: {}]
  %s16 = inlined_call_operand.vmem [shape: f32[4,2], index: 16, kind: output, shape index: {}]
  %s17 = sld [smem:[#allocation0]]
  $region94: #{tpu_custom_call.1} parent=0
    _
  %s19 = ssub.s32 1, %s17
  %s20 = scalar_select 0, %s19, %s17
  %v21 = vstv %s8
  %22 = vst [vmem:[#allocation2] sm:$0x1] %v21
  %v23 = vstv %s15
  %24 = vst [vmem:[#allocation3] sm:$0x1] %v23
  $region1: #{tpu_custom_call.1} parent=0
    #allocation4 [shape = 'u8[2048]{0}', space=vmem, size = 0x800, scoped, tag = 'input window, operand 0, single buffered']
    #allocation5 [shape = 's32[1]{0}', space=sflag, size = 0x4, scoped, tag = 'scoped memory for tpu_custom_call.1']
    #allocation6 [shape = 'u8[2048]{0}', space=vmem, size = 0x800, scoped, tag = 'input window, operand 1, single buffered']
    #allocation7 [shape = 's32[1]{0}', space=sflag, size = 0x4, scoped, tag = 'scoped memory for tpu_custom_call.1']
    #allocation8 [shape = 'u8[4096]{0}', space=vmem, size = 0x1000, scoped, tag = 'input window, operand 3, single buffered']
    #allocation9 [shape = 'u8[512]{0}', space=vmem, size = 0x400, scoped, tag = 'input window, operand 4, single buffered']
    #allocation10 [shape = 's32[1]{0}', space=sflag, size = 0x4, scoped, tag = 'scoped memory for tpu_custom_call.1']
    #allocation11 [shape = 'u8[512]{0}', space=vmem, size = 0x400, scoped, tag = 'input window, operand 6, single buffered']
    %25 = vsyncpa [#allocation5], 0
    %26 = vsyncpa [#allocation7], 0
    %27 = vsyncpa [#allocation10], 0
    // Predicated region
    $region2: #{tpu_custom_call.1} parent=1 // pred_check
      _
    $region3: #{tpu_custom_call.1} parent=1 // pred_check_branch
      %29 = sbr.rel (0) target = $region5
    $region4: #{tpu_custom_call.1} parent=1 // pred_region
      %s31 = ssub.s32 64, 64
      %32 = vsyncadd [#allocation5], %s31
      %s34 = sshll.u32 [#allocation4], 4
      %s35 = int_to_ptr.vmem [resolvable:$true] %s34
      %37 = dma.hbm_to_vmem [thread:$0]  %s0, 64, %s35, [#allocation5]
    $region5: #{tpu_custom_call.1} parent=1 // pred_fallthru
      _
    // Predicated region
    $region6: #{tpu_custom_call.1} parent=1 // pred_check
      _
    $region7: #{tpu_custom_call.1} parent=1 // pred_check_branch
      %39 = sbr.rel (0) target = $region9
    $region8: #{tpu_custom_call.1} parent=1 // pred_region
      %s41 = ssub.s32 64, 64
      %42 = vsyncadd [#allocation7], %s41
      %s44 = sshll.u32 [#allocation6], 4
      %s45 = int_to_ptr.vmem [resolvable:$true] %s44
      %47 = dma.hbm_to_vmem [thread:$0]  %s1, 64, %s45, [#allocation7]
    $region9: #{tpu_custom_call.1} parent=1 // pred_fallthru
      _
    // Predicated region
    $region10: #{tpu_custom_call.1} parent=1 // pred_check
      _
    $region11: #{tpu_custom_call.1} parent=1 // pred_check_branch
      %49 = sbr.rel (0) target = $region13
    $region12: #{tpu_custom_call.1} parent=1 // pred_region
      _
    $region13: #{tpu_custom_call.1} parent=1 // pred_fallthru
      _
    // Predicated region
    $region14: #{tpu_custom_call.1} parent=1 // pred_check
      _
    $region15: #{tpu_custom_call.1} parent=1 // pred_check_branch
      %51 = sbr.rel (0) target = $region17
    $region16: #{tpu_custom_call.1} parent=1 // pred_region
      %s53 = ssub.s32 128, 128
      %54 = vsyncadd [#allocation7], %s53
      %s56 = sshll.u32 [#allocation8], 4
      %s57 = int_to_ptr.vmem [resolvable:$true] %s56
      %59 = dma.hbm_to_vmem [thread:$0]  %s3, 128, %s57, [#allocation7]
    $region17: #{tpu_custom_call.1} parent=1 // pred_fallthru
      _
    // Predicated region
    $region18: #{tpu_custom_call.1} parent=1 // pred_check
      _
    $region19: #{tpu_custom_call.1} parent=1 // pred_check_branch
      %61 = sbr.rel (0) target = $region21
    $region20: #{tpu_custom_call.1} parent=1 // pred_region
      %s63 = ssub.s32 16, 16
      %64 = vsyncadd [#allocation10], %s63
      %s66 = sshll.u32 [#allocation9], 4
      %s67 = int_to_ptr.vmem [resolvable:$true] %s66
      %69 = dma.hbm_to_vmem [thread:$0]  %s4, 16, %s67, [#allocation10]
    $region21: #{tpu_custom_call.1} parent=1 // pred_fallthru
      _
    // Predicated region
    $region22: #{tpu_custom_call.1} parent=1 // pred_check
      _
    $region23: #{tpu_custom_call.1} parent=1 // pred_check_branch
      %71 = sbr.rel (0) target = $region25
    $region24: #{tpu_custom_call.1} parent=1 // pred_region
      _
    $region25: #{tpu_custom_call.1} parent=1 // pred_fallthru
      _
    // Predicated region
    $region26: #{tpu_custom_call.1} parent=1 // pred_check
      _
    $region27: #{tpu_custom_call.1} parent=1 // pred_check_branch
      %73 = sbr.rel (0) target = $region29
    $region28: #{tpu_custom_call.1} parent=1 // pred_region
      %s75 = ssub.s32 16, 16
      %76 = vsyncadd [#allocation10], %s75
      %s78 = sshll.u32 [#allocation11], 4
      %s79 = int_to_ptr.vmem [resolvable:$true] %s78
      %81 = dma.hbm_to_vmem [thread:$0]  %s6, 16, %s79, [#allocation10]
    $region29: #{tpu_custom_call.1} parent=1 // pred_fallthru
      _
    // Predicated region
    $region30: #{tpu_custom_call.1} parent=1 // pred_check
      _
    $region31: #{tpu_custom_call.1} parent=1 // pred_check_branch
      %83 = sbr.rel (0) target = $region33
    $region32: #{tpu_custom_call.1} parent=1 // pred_region
      _
    $region33: #{tpu_custom_call.1} parent=1 // pred_fallthru
      _
    // Predicated region
    $region34: #{tpu_custom_call.1} parent=1 // pred_check
      _
    $region35: #{tpu_custom_call.1} parent=1 // pred_check_branch
      %85 = sbr.rel (0) target = $region37
    $region36: #{tpu_custom_call.1} parent=1 // pred_region
      _
    $region37: #{tpu_custom_call.1} parent=1 // pred_fallthru
      _
    // Predicated region
    $region38: #{tpu_custom_call.1} parent=1 // pred_check
      _
    $region39: #{tpu_custom_call.1} parent=1 // pred_check_branch
      %87 = sbr.rel (0) target = $region41
    $region40: #{tpu_custom_call.1} parent=1 // pred_region
      _
    $region41: #{tpu_custom_call.1} parent=1 // pred_fallthru
      _
    // Predicated region
    $region42: #{tpu_custom_call.1} parent=1 // pred_check
      _
    $region43: #{tpu_custom_call.1} parent=1 // pred_check_branch
      %89 = sbr.rel (0) target = $region45
    $region44: #{tpu_custom_call.1} parent=1 // pred_region
      _
    $region45: #{tpu_custom_call.1} parent=1 // pred_fallthru
      _
    // Predicated region
    $region46: #{tpu_custom_call.1} parent=1 // pred_check
      _
    $region47: #{tpu_custom_call.1} parent=1 // pred_check_branch
      %91 = sbr.rel (0) target = $region49
    $region48: #{tpu_custom_call.1} parent=1 // pred_region
      _
    $region49: #{tpu_custom_call.1} parent=1 // pred_fallthru
      _
    // Predicated region
    $region50: #{tpu_custom_call.1} parent=1 // pred_check
      _
    $region51: #{tpu_custom_call.1} parent=1 // pred_check_branch
      %93 = sbr.rel (0) target = $region53
    $region52: #{tpu_custom_call.1} parent=1 // pred_region
      _
    $region53: #{tpu_custom_call.1} parent=1 // pred_fallthru
      _
    // Predicated region
    $region54: #{tpu_custom_call.1} parent=1 // pred_check
      _
    $region55: #{tpu_custom_call.1} parent=1 // pred_check_branch
      %95 = sbr.rel (0) target = $region57
    $region56: #{tpu_custom_call.1} parent=1 // pred_region
      _
    $region57: #{tpu_custom_call.1} parent=1 // pred_fallthru
      _
    // Predicated region
    $region58: #{tpu_custom_call.1} parent=1 // pred_check
      _
    $region59: #{tpu_custom_call.1} parent=1 // pred_check_branch
      %97 = sbr.rel (0) target = $region61
    $region60: #{tpu_custom_call.1} parent=1 // pred_region
      _
    $region61: #{tpu_custom_call.1} parent=1 // pred_fallthru
      _
    // Predicated region
    $region62: #{tpu_custom_call.1} parent=1 // pred_check
      _
    $region63: #{tpu_custom_call.1} parent=1 // pred_check_branch
      %99 = sbr.rel (0) target = $region65
    $region64: #{tpu_custom_call.1} parent=1 // pred_region
      _
    $region65: #{tpu_custom_call.1} parent=1 // pred_fallthru
      _
    // Predicated region
    $region66: #{tpu_custom_call.1} parent=1 // pred_check
      _
    $region67: #{tpu_custom_call.1} parent=1 // pred_check_branch
      %101 = sbr.rel (0) target = $region69
    $region68: #{tpu_custom_call.1} parent=1 // pred_region
      %102 = dma.done [#allocation5], 64
    $region69: #{tpu_custom_call.1} parent=1 // pred_fallthru
      _
    // Predicated region
    $region70: #{tpu_custom_call.1} parent=1 // pred_check
      _
    $region71: #{tpu_custom_call.1} parent=1 // pred_check_branch
      %104 = sbr.rel (0) target = $region73
    $region72: #{tpu_custom_call.1} parent=1 // pred_region
      %105 = dma.done [#allocation7], 64
    $region73: #{tpu_custom_call.1} parent=1 // pred_fallthru
      _
    // Predicated region
    $region74: #{tpu_custom_call.1} parent=1 // pred_check
      _
    $region75: #{tpu_custom_call.1} parent=1 // pred_check_branch
      %107 = sbr.rel (0) target = $region77
    $region76: #{tpu_custom_call.1} parent=1 // pred_region
      %108 = dma.done [#allocation7], 128
    $region77: #{tpu_custom_call.1} parent=1 // pred_fallthru
      _
    // Predicated region
    $region78: #{tpu_custom_call.1} parent=1 // pred_check
      _
    $region79: #{tpu_custom_call.1} parent=1 // pred_check_branch
      %110 = sbr.rel (0) target = $region81
    $region80: #{tpu_custom_call.1} parent=1 // pred_region
      %111 = dma.done [#allocation10], 16
    $region81: #{tpu_custom_call.1} parent=1 // pred_fallthru
      _
    // Predicated region
    $region82: #{tpu_custom_call.1} parent=1 // pred_check
      _
    $region83: #{tpu_custom_call.1} parent=1 // pred_check_branch
      %113 = sbr.rel (0) target = $region85
    $region84: #{tpu_custom_call.1} parent=1 // pred_region
      %114 = dma.done [#allocation10], 16
    $region85: #{tpu_custom_call.1} parent=1 // pred_fallthru
      _
    %v115 = vld [vmem:[#allocation4] sm:$0xf]
    %v116 = vld [vmem:[#allocation6] sm:$0xf]
    %v117 = vld [vmem:[%s2] sm:$0xff]
    %v118 = vld [vmem:[%s2 + $0x8] sm:$0xff]
    %v119 = vld [vmem:[#allocation8] sm:$0xff]
    %vm120 = vcmask 64512
    %v122 = vsel %vm120, %v116, 0
    %124 = vmatprep.subr.mxu0 0.0
    %125 = vmatpush1.msra.mxu0 %v119
    %126 = vmatprep.subr.mxu0 0.0
    %127 = vmatpush1.msra.mxu0 0.0
    %128 = vmatprep.subr.mxu0 0.0
    %129 = vmatpush1.msra.mxu0 0.0
    %130 = vmatprep.subr.mxu0 0.0
    %131 = vmatpush1.msra.mxu0 0.0
    %132 = vmatprep.subr.mxu0 0.0
    %133 = vmatpush1.msra.mxu0 0.0
    %134 = vmatprep.subr.mxu0 0.0
    %135 = vmatpush1.msra.mxu0 0.0
    %136 = vmatprep.subr.mxu0 0.0
    %137 = vmatpush1.msra.mxu0 0.0
    %138 = vmatprep.subr.mxu0 0.0
    %139 = vmatpush1.msra.mxu0 0.0
    %140 = vmatprep.subr.mxu0 0.0
    %141 = vmatpush1.msra.mxu0 0.0
    %142 = vmatprep.subr.mxu0 0.0
    %143 = vmatpush1.msra.mxu0 0.0
    %144 = vmatprep.subr.mxu0 0.0
    %145 = vmatpush1.msra.mxu0 0.0
    %146 = vmatprep.subr.mxu0 0.0
    %147 = vmatpush1.msra.mxu0 0.0
    %148 = vmatprep.subr.mxu0 0.0
    %149 = vmatpush1.msra.mxu0 0.0
    %150 = vmatprep.subr.mxu0 0.0
    %151 = vmatpush1.msra.mxu0 0.0
    %152 = vmatprep.subr.mxu0 0.0
    %153 = vmatpush1.msra.mxu0 0.0
    %154 = vmatprep.subr.mxu0 0.0
    %155 = vmatpush1.msra.mxu0 0.0
    %156 = vmatprep.subr.mxu0 0.0
    %157 = vmatpush1.msra.mxu0 0.0
    %158 = vmatprep.subr.mxu0 0.0
    %159 = vmatpush1.msra.mxu0 0.0
    %160 = vmatprep.subr.mxu0 0.0
    %161 = vmatpush1.msra.mxu0 0.0
    %162 = vmatprep.subr.mxu0 0.0
    %163 = vmatpush1.msra.mxu0 0.0
    %164 = vmatprep.subr.mxu0 0.0
    %165 = vmatpush1.msra.mxu0 0.0
    %166 = vmatprep.subr.mxu0 0.0
    %167 = vmatpush1.msra.mxu0 0.0
    %168 = vmatprep.subr.mxu0 0.0
    %169 = vmatpush1.msra.mxu0 0.0
    %170 = vmatprep.subr.mxu0 0.0
    %171 = vmatpush1.msra.mxu0 0.0
    %172 = vmatprep.subr.mxu0 0.0
    %173 = vmatpush1.msra.mxu0 0.0
    %174 = vmatprep.subr.mxu0 0.0
    %175 = vmatpush1.msra.mxu0 0.0
    %176 = vmatprep.subr.mxu0 0.0
    %177 = vmatpush1.msra.mxu0 0.0
    %178 = vmatprep.subr.mxu0 0.0
    %179 = vmatpush1.msra.mxu0 0.0
    %180 = vmatprep.subr.mxu0 0.0
    %181 = vmatpush1.msra.mxu0 0.0
    %182 = vmatprep.subr.mxu0 0.0
    %183 = vmatpush1.msra.mxu0 0.0
    %184 = vmatprep.subr.mxu0 0.0
    %185 = vmatpush1.msra.mxu0 0.0
    %186 = vmatprep.subr.mxu0 0.0
    %187 = vmatpush1.msra.mxu0 0.0
    %188 = vmatprep.mubr.f32.mxu0 0.0
    %189 = vmatmul.mubr.f32.gmra.mrb[0].mxu0 %v122
    %v190 = vpop.f32.mrb[0].mxu0
    %v191 = vadd.f32 0.0, %v190
    %v192 = vpop.f32.mrb[0].mxu0
    %193 = vdwg.mxu0
    %vm194 = vcmask 130048
    %v196 = vsel %vm194, %v115, 0
    %198 = vmatprep.subr.mxu0 0.0
    %199 = vmatpush1.msra.mxu0 %v117
    %200 = vmatprep.subr.mxu0 0.0
    %201 = vmatpush1.msra.mxu0 %v118
    %202 = vmatprep.subr.mxu0 0.0
    %203 = vmatpush1.msra.mxu0 0.0
    %204 = vmatprep.subr.mxu0 0.0
    %205 = vmatpush1.msra.mxu0 0.0
    %206 = vmatprep.subr.mxu0 0.0
    %207 = vmatpush1.msra.mxu0 0.0
    %208 = vmatprep.subr.mxu0 0.0
    %209 = vmatpush1.msra.mxu0 0.0
    %210 = vmatprep.subr.mxu0 0.0
    %211 = vmatpush1.msra.mxu0 0.0
    %212 = vmatprep.subr.mxu0 0.0
    %213 = vmatpush1.msra.mxu0 0.0
    %214 = vmatprep.subr.mxu0 0.0
    %215 = vmatpush1.msra.mxu0 0.0
    %216 = vmatprep.subr.mxu0 0.0
    %217 = vmatpush1.msra.mxu0 0.0
    %218 = vmatprep.subr.mxu0 0.0
    %219 = vmatpush1.msra.mxu0 0.0
    %220 = vmatprep.subr.mxu0 0.0
    %221 = vmatpush1.msra.mxu0 0.0
    %222 = vmatprep.subr.mxu0 0.0
    %223 = vmatpush1.msra.mxu0 0.0
    %224 = vmatprep.subr.mxu0 0.0
    %225 = vmatpush1.msra.mxu0 0.0
    %226 = vmatprep.subr.mxu0 0.0
    %227 = vmatpush1.msra.mxu0 0.0
    %228 = vmatprep.subr.mxu0 0.0
    %229 = vmatpush1.msra.mxu0 0.0
    %230 = vmatprep.subr.mxu0 0.0
    %231 = vmatpush1.msra.mxu0 0.0
    %232 = vmatprep.subr.mxu0 0.0
    %233 = vmatpush1.msra.mxu0 0.0
    %234 = vmatprep.subr.mxu0 0.0
    %235 = vmatpush1.msra.mxu0 0.0
    %236 = vmatprep.subr.mxu0 0.0
    %237 = vmatpush1.msra.mxu0 0.0
    %238 = vmatprep.subr.mxu0 0.0
    %239 = vmatpush1.msra.mxu0 0.0
    %240 = vmatprep.subr.mxu0 0.0
    %241 = vmatpush1.msra.mxu0 0.0
    %242 = vmatprep.subr.mxu0 0.0
    %243 = vmatpush1.msra.mxu0 0.0
    %244 = vmatprep.subr.mxu0 0.0
    %245 = vmatpush1.msra.mxu0 0.0
    %246 = vmatprep.subr.mxu0 0.0
    %247 = vmatpush1.msra.mxu0 0.0
    %248 = vmatprep.subr.mxu0 0.0
    %249 = vmatpush1.msra.mxu0 0.0
    %250 = vmatprep.subr.mxu0 0.0
    %251 = vmatpush1.msra.mxu0 0.0
    %252 = vmatprep.subr.mxu0 0.0
    %253 = vmatpush1.msra.mxu0 0.0
    %254 = vmatprep.subr.mxu0 0.0
    %255 = vmatpush1.msra.mxu0 0.0
    %256 = vmatprep.subr.mxu0 0.0
    %257 = vmatpush1.msra.mxu0 0.0
    %258 = vmatprep.subr.mxu0 0.0
    %259 = vmatpush1.msra.mxu0 0.0
    %260 = vmatprep.subr.mxu0 0.0
    %261 = vmatpush1.msra.mxu0 0.0
    %262 = vmatprep.mubr.f32.mxu0 0.0
    %263 = vmatmul.mubr.f32.gmra.mrb[0].mxu0 %v196
    %v264 = vpop.f32.mrb[0].mxu0
    %v265 = vadd.f32 %v191, %v264
    %v266 = vpop.f32.mrb[0].mxu0
    %267 = vdwg.mxu0
    %v268 = vld [vmem:[#allocation9] sm:$0x1]
    %v270 = vlaneseq
    %v271 = vshrl.u32 %v270, 7
    %v272 = vsub.s32 0, %v271
    %v273 = vrot.slane %v268, %v272
    %v275 = vadd.f32 %v265, %v273
    %v276 = vmax.f32 %v275, 0.0
    %v277 = vld [vmem:[%s5] sm:$0xff]
    %v278 = vld [vmem:[%s5 + $0x8] sm:$0xff]
    %v279 = vld [vmem:[%s5 + $0x10] sm:$0xff]
    %v280 = vld [vmem:[%s5 + $0x18] sm:$0xff]
    %v281 = vld [vmem:[#allocation11] sm:$0x1]
    %v283 = vlaneseq
    %v284 = vshrl.u32 %v283, 7
    %v285 = vsub.s32 0, %v284
    %v286 = vrot.slane %v281, %v285
    %vm288 = vcmask 261120
    %v290 = vsel %vm288, %v276, 0
    %292 = vmatprep.subr.mxu0 0.0
    %293 = vmatpush1.msra.mxu0 %v277
    %294 = vmatprep.subr.mxu0 0.0
    %295 = vmatpush1.msra.mxu0 %v278
    %296 = vmatprep.subr.mxu0 0.0
    %297 = vmatpush1.msra.mxu0 %v279
    %298 = vmatprep.subr.mxu0 0.0
    %299 = vmatpush1.msra.mxu0 %v280
    %300 = vmatprep.subr.mxu0 0.0
    %301 = vmatpush1.msra.mxu0 0.0
    %302 = vmatprep.subr.mxu0 0.0
    %303 = vmatpush1.msra.mxu0 0.0
    %304 = vmatprep.subr.mxu0 0.0
    %305 = vmatpush1.msra.mxu0 0.0
    %306 = vmatprep.subr.mxu0 0.0
    %307 = vmatpush1.msra.mxu0 0.0
    %308 = vmatprep.subr.mxu0 0.0
    %309 = vmatpush1.msra.mxu0 0.0
    %310 = vmatprep.subr.mxu0 0.0
    %311 = vmatpush1.msra.mxu0 0.0
    %312 = vmatprep.subr.mxu0 0.0
    %313 = vmatpush1.msra.mxu0 0.0
    %314 = vmatprep.subr.mxu0 0.0
    %315 = vmatpush1.msra.mxu0 0.0
    %316 = vmatprep.subr.mxu0 0.0
    %317 = vmatpush1.msra.mxu0 0.0
    %318 = vmatprep.subr.mxu0 0.0
    %319 = vmatpush1.msra.mxu0 0.0
    %320 = vmatprep.subr.mxu0 0.0
    %321 = vmatpush1.msra.mxu0 0.0
    %322 = vmatprep.subr.mxu0 0.0
    %323 = vmatpush1.msra.mxu0 0.0
    %324 = vmatprep.subr.mxu0 0.0
    %325 = vmatpush1.msra.mxu0 0.0
    %326 = vmatprep.subr.mxu0 0.0
    %327 = vmatpush1.msra.mxu0 0.0
    %328 = vmatprep.subr.mxu0 0.0
    %329 = vmatpush1.msra.mxu0 0.0
    %330 = vmatprep.subr.mxu0 0.0
    %331 = vmatpush1.msra.mxu0 0.0
    %332 = vmatprep.subr.mxu0 0.0
    %333 = vmatpush1.msra.mxu0 0.0
    %334 = vmatprep.subr.mxu0 0.0
    %335 = vmatpush1.msra.mxu0 0.0
    %336 = vmatprep.subr.mxu0 0.0
    %337 = vmatpush1.msra.mxu0 0.0
    %338 = vmatprep.subr.mxu0 0.0
    %339 = vmatpush1.msra.mxu0 0.0
    %340 = vmatprep.subr.mxu0 0.0
    %341 = vmatpush1.msra.mxu0 0.0
    %342 = vmatprep.subr.mxu0 0.0
    %343 = vmatpush1.msra.mxu0 0.0
    %344 = vmatprep.subr.mxu0 0.0
    %345 = vmatpush1.msra.mxu0 0.0
    %346 = vmatprep.subr.mxu0 0.0
    %347 = vmatpush1.msra.mxu0 0.0
    %348 = vmatprep.subr.mxu0 0.0
    %349 = vmatpush1.msra.mxu0 0.0
    %350 = vmatprep.subr.mxu0 0.0
    %351 = vmatpush1.msra.mxu0 0.0
    %352 = vmatprep.subr.mxu0 0.0
    %353 = vmatpush1.msra.mxu0 0.0
    %354 = vmatprep.subr.mxu0 0.0
    %355 = vmatpush1.msra.mxu0 0.0
    %356 = vmatprep.mubr.f32.mxu0 0.0
    %357 = vmatmul.mubr.f32.gmra.mrb[0].mxu0 %v290
    %v358 = vpop.f32.mrb[0].mxu0
    %v359 = vadd.f32 %v286, %v358
    %v360 = vpop.f32.mrb[0].mxu0
    %361 = vdwg.mxu0
    %v362 = vmax.f32 %v359, 0.0
    %v363 = vld [vmem:[%s7] sm:$0xff]
    %v364 = vld [vmem:[%s7 + $0x8] sm:$0xff]
    %v365 = vld [vmem:[%s7 + $0x10] sm:$0xff]
    %v366 = vld [vmem:[%s7 + $0x18] sm:$0xff]
    %v367 = vld [vmem:[#allocation2] sm:$0x1]
    %v369 = vlaneseq
    %v370 = vshrl.u32 %v369, 7
    %v371 = vsub.s32 0, %v370
    %v372 = vrot.slane %v367, %v371
    %v375 = vsel %vm288, %v362, 0
    %377 = vmatprep.subr.mxu0 0.0
    %378 = vmatpush1.msra.mxu0 %v363
    %379 = vmatprep.subr.mxu0 0.0
    %380 = vmatpush1.msra.mxu0 %v364
    %381 = vmatprep.subr.mxu0 0.0
    %382 = vmatpush1.msra.mxu0 %v365
    %383 = vmatprep.subr.mxu0 0.0
    %384 = vmatpush1.msra.mxu0 %v366
    %385 = vmatprep.subr.mxu0 0.0
    %386 = vmatpush1.msra.mxu0 0.0
    %387 = vmatprep.subr.mxu0 0.0
    %388 = vmatpush1.msra.mxu0 0.0
    %389 = vmatprep.subr.mxu0 0.0
    %390 = vmatpush1.msra.mxu0 0.0
    %391 = vmatprep.subr.mxu0 0.0
    %392 = vmatpush1.msra.mxu0 0.0
    %393 = vmatprep.subr.mxu0 0.0
    %394 = vmatpush1.msra.mxu0 0.0
    %395 = vmatprep.subr.mxu0 0.0
    %396 = vmatpush1.msra.mxu0 0.0
    %397 = vmatprep.subr.mxu0 0.0
    %398 = vmatpush1.msra.mxu0 0.0
    %399 = vmatprep.subr.mxu0 0.0
    %400 = vmatpush1.msra.mxu0 0.0
    %401 = vmatprep.subr.mxu0 0.0
    %402 = vmatpush1.msra.mxu0 0.0
    %403 = vmatprep.subr.mxu0 0.0
    %404 = vmatpush1.msra.mxu0 0.0
    %405 = vmatprep.subr.mxu0 0.0
    %406 = vmatpush1.msra.mxu0 0.0
    %407 = vmatprep.subr.mxu0 0.0
    %408 = vmatpush1.msra.mxu0 0.0
    %409 = vmatprep.subr.mxu0 0.0
    %410 = vmatpush1.msra.mxu0 0.0
    %411 = vmatprep.subr.mxu0 0.0
    %412 = vmatpush1.msra.mxu0 0.0
    %413 = vmatprep.subr.mxu0 0.0
    %414 = vmatpush1.msra.mxu0 0.0
    %415 = vmatprep.subr.mxu0 0.0
    %416 = vmatpush1.msra.mxu0 0.0
    %417 = vmatprep.subr.mxu0 0.0
    %418 = vmatpush1.msra.mxu0 0.0
    %419 = vmatprep.subr.mxu0 0.0
    %420 = vmatpush1.msra.mxu0 0.0
    %421 = vmatprep.subr.mxu0 0.0
    %422 = vmatpush1.msra.mxu0 0.0
    %423 = vmatprep.subr.mxu0 0.0
    %424 = vmatpush1.msra.mxu0 0.0
    %425 = vmatprep.subr.mxu0 0.0
    %426 = vmatpush1.msra.mxu0 0.0
    %427 = vmatprep.subr.mxu0 0.0
    %428 = vmatpush1.msra.mxu0 0.0
    %429 = vmatprep.subr.mxu0 0.0
    %430 = vmatpush1.msra.mxu0 0.0
    %431 = vmatprep.subr.mxu0 0.0
    %432 = vmatpush1.msra.mxu0 0.0
    %433 = vmatprep.subr.mxu0 0.0
    %434 = vmatpush1.msra.mxu0 0.0
    %435 = vmatprep.subr.mxu0 0.0
    %436 = vmatpush1.msra.mxu0 0.0
    %437 = vmatprep.subr.mxu0 0.0
    %438 = vmatpush1.msra.mxu0 0.0
    %439 = vmatprep.subr.mxu0 0.0
    %440 = vmatpush1.msra.mxu0 0.0
    %441 = vmatprep.mubr.f32.mxu0 0.0
    %442 = vmatmul.mubr.f32.gmra.mrb[0].mxu0 %v375
    %v443 = vpop.f32.mrb[0].mxu0
    %v444 = vadd.f32 %v372, %v443
    %v445 = vpop.f32.mrb[0].mxu0
    %446 = vdwg.mxu0
    %vm447 = vcmask 3072
    %448 = vst.msk [vmem:[%s16] sm:$0xf] %vm447, %v444
    %v449 = vld [vmem:[%s9] sm:$0xff]
    %v450 = vld [vmem:[%s9 + $0x8] sm:$0xff]
    %v451 = vld [vmem:[%s10] sm:$0xff]
    %452 = vmatprep.subr.mxu0 0.0
    %453 = vmatpush1.msra.mxu0 %v451
    %454 = vmatprep.subr.mxu0 0.0
    %455 = vmatpush1.msra.mxu0 0.0
    %456 = vmatprep.subr.mxu0 0.0
    %457 = vmatpush1.msra.mxu0 0.0
    %458 = vmatprep.subr.mxu0 0.0
    %459 = vmatpush1.msra.mxu0 0.0
    %460 = vmatprep.subr.mxu0 0.0
    %461 = vmatpush1.msra.mxu0 0.0
    %462 = vmatprep.subr.mxu0 0.0
    %463 = vmatpush1.msra.mxu0 0.0
    %464 = vmatprep.subr.mxu0 0.0
    %465 = vmatpush1.msra.mxu0 0.0
    %466 = vmatprep.subr.mxu0 0.0
    %467 = vmatpush1.msra.mxu0 0.0
    %468 = vmatprep.subr.mxu0 0.0
    %469 = vmatpush1.msra.mxu0 0.0
    %470 = vmatprep.subr.mxu0 0.0
    %471 = vmatpush1.msra.mxu0 0.0
    %472 = vmatprep.subr.mxu0 0.0
    %473 = vmatpush1.msra.mxu0 0.0
    %474 = vmatprep.subr.mxu0 0.0
    %475 = vmatpush1.msra.mxu0 0.0
    %476 = vmatprep.subr.mxu0 0.0
    %477 = vmatpush1.msra.mxu0 0.0
    %478 = vmatprep.subr.mxu0 0.0
    %479 = vmatpush1.msra.mxu0 0.0
    %480 = vmatprep.subr.mxu0 0.0
    %481 = vmatpush1.msra.mxu0 0.0
    %482 = vmatprep.subr.mxu0 0.0
    %483 = vmatpush1.msra.mxu0 0.0
    %484 = vmatprep.subr.mxu0 0.0
    %485 = vmatpush1.msra.mxu0 0.0
    %486 = vmatprep.subr.mxu0 0.0
    %487 = vmatpush1.msra.mxu0 0.0
    %488 = vmatprep.subr.mxu0 0.0
    %489 = vmatpush1.msra.mxu0 0.0
    %490 = vmatprep.subr.mxu0 0.0
    %491 = vmatpush1.msra.mxu0 0.0
    %492 = vmatprep.subr.mxu0 0.0
    %493 = vmatpush1.msra.mxu0 0.0
    %494 = vmatprep.subr.mxu0 0.0
    %495 = vmatpush1.msra.mxu0 0.0
    %496 = vmatprep.subr.mxu0 0.0
    %497 = vmatpush1.msra.mxu0 0.0
    %498 = vmatprep.subr.mxu0 0.0
    %499 = vmatpush1.msra.mxu0 0.0
    %500 = vmatprep.subr.mxu0 0.0
    %501 = vmatpush1.msra.mxu0 0.0
    %502 = vmatprep.subr.mxu0 0.0
    %503 = vmatpush1.msra.mxu0 0.0
    %504 = vmatprep.subr.mxu0 0.0
    %505 = vmatpush1.msra.mxu0 0.0
    %506 = vmatprep.subr.mxu0 0.0
    %507 = vmatpush1.msra.mxu0 0.0
    %508 = vmatprep.subr.mxu0 0.0
    %509 = vmatpush1.msra.mxu0 0.0
    %510 = vmatprep.subr.mxu0 0.0
    %511 = vmatpush1.msra.mxu0 0.0
    %512 = vmatprep.subr.mxu0 0.0
    %513 = vmatpush1.msra.mxu0 0.0
    %514 = vmatprep.subr.mxu0 0.0
    %515 = vmatpush1.msra.mxu0 0.0
    %516 = vmatprep.mubr.f32.mxu0 0.0
    %517 = vmatmul.mubr.f32.gmra.mrb[0].mxu0 %v122
    %v518 = vpop.f32.mrb[0].mxu0
    %v519 = vadd.f32 0.0, %v518
    %v520 = vpop.f32.mrb[0].mxu0
    %521 = vdwg.mxu0
    %522 = vmatprep.subr.mxu0 0.0
    %523 = vmatpush1.msra.mxu0 %v449
    %524 = vmatprep.subr.mxu0 0.0
    %525 = vmatpush1.msra.mxu0 %v450
    %526 = vmatprep.subr.mxu0 0.0
    %527 = vmatpush1.msra.mxu0 0.0
    %528 = vmatprep.subr.mxu0 0.0
    %529 = vmatpush1.msra.mxu0 0.0
    %530 = vmatprep.subr.mxu0 0.0
    %531 = vmatpush1.msra.mxu0 0.0
    %532 = vmatprep.subr.mxu0 0.0
    %533 = vmatpush1.msra.mxu0 0.0
    %534 = vmatprep.subr.mxu0 0.0
    %535 = vmatpush1.msra.mxu0 0.0
    %536 = vmatprep.subr.mxu0 0.0
    %537 = vmatpush1.msra.mxu0 0.0
    %538 = vmatprep.subr.mxu0 0.0
    %539 = vmatpush1.msra.mxu0 0.0
    %540 = vmatprep.subr.mxu0 0.0
    %541 = vmatpush1.msra.mxu0 0.0
    %542 = vmatprep.subr.mxu0 0.0
    %543 = vmatpush1.msra.mxu0 0.0
    %544 = vmatprep.subr.mxu0 0.0
    %545 = vmatpush1.msra.mxu0 0.0
    %546 = vmatprep.subr.mxu0 0.0
    %547 = vmatpush1.msra.mxu0 0.0
    %548 = vmatprep.subr.mxu0 0.0
    %549 = vmatpush1.msra.mxu0 0.0
    %550 = vmatprep.subr.mxu0 0.0
    %551 = vmatpush1.msra.mxu0 0.0
    %552 = vmatprep.subr.mxu0 0.0
    %553 = vmatpush1.msra.mxu0 0.0
    %554 = vmatprep.subr.mxu0 0.0
    %555 = vmatpush1.msra.mxu0 0.0
    %556 = vmatprep.subr.mxu0 0.0
    %557 = vmatpush1.msra.mxu0 0.0
    %558 = vmatprep.subr.mxu0 0.0
    %559 = vmatpush1.msra.mxu0 0.0
    %560 = vmatprep.subr.mxu0 0.0
    %561 = vmatpush1.msra.mxu0 0.0
    %562 = vmatprep.subr.mxu0 0.0
    %563 = vmatpush1.msra.mxu0 0.0
    %564 = vmatprep.subr.mxu0 0.0
    %565 = vmatpush1.msra.mxu0 0.0
    %566 = vmatprep.subr.mxu0 0.0
    %567 = vmatpush1.msra.mxu0 0.0
    %568 = vmatprep.subr.mxu0 0.0
    %569 = vmatpush1.msra.mxu0 0.0
    %570 = vmatprep.subr.mxu0 0.0
    %571 = vmatpush1.msra.mxu0 0.0
    %572 = vmatprep.subr.mxu0 0.0
    %573 = vmatpush1.msra.mxu0 0.0
    %574 = vmatprep.subr.mxu0 0.0
    %575 = vmatpush1.msra.mxu0 0.0
    %576 = vmatprep.subr.mxu0 0.0
    %577 = vmatpush1.msra.mxu0 0.0
    %578 = vmatprep.subr.mxu0 0.0
    %579 = vmatpush1.msra.mxu0 0.0
    %580 = vmatprep.subr.mxu0 0.0
    %581 = vmatpush1.msra.mxu0 0.0
    %582 = vmatprep.subr.mxu0 0.0
    %583 = vmatpush1.msra.mxu0 0.0
    %584 = vmatprep.subr.mxu0 0.0
    %585 = vmatpush1.msra.mxu0 0.0
    %586 = vmatprep.mubr.f32.mxu0 0.0
    %587 = vmatmul.mubr.f32.gmra.mrb[0].mxu0 %v196
    %v588 = vpop.f32.mrb[0].mxu0
    %v589 = vadd.f32 %v519, %v588
    %v590 = vpop.f32.mrb[0].mxu0
    %591 = vdwg.mxu0
    %v592 = vld [vmem:[%s11] sm:$0x1]
    %v594 = vlaneseq
    %v595 = vshrl.u32 %v594, 7
    %v596 = vsub.s32 0, %v595
    %v597 = vrot.slane %v592, %v596
    %v599 = vadd.f32 %v589, %v597
    %v600 = vmax.f32 %v599, 0.0
    %v601 = vld [vmem:[%s12] sm:$0xff]
    %v602 = vld [vmem:[%s12 + $0x8] sm:$0xff]
    %v603 = vld [vmem:[%s12 + $0x10] sm:$0xff]
    %v604 = vld [vmem:[%s12 + $0x18] sm:$0xff]
    %v605 = vld [vmem:[%s13] sm:$0x1]
    %v607 = vlaneseq
    %v608 = vshrl.u32 %v607, 7
    %v609 = vsub.s32 0, %v608
    %v610 = vrot.slane %v605, %v609
    %v613 = vsel %vm288, %v600, 0
    %615 = vmatprep.subr.mxu0 0.0
    %616 = vmatpush1.msra.mxu0 %v601
    %617 = vmatprep.subr.mxu0 0.0
    %618 = vmatpush1.msra.mxu0 %v602
    %619 = vmatprep.subr.mxu0 0.0
    %620 = vmatpush1.msra.mxu0 %v603
    %621 = vmatprep.subr.mxu0 0.0
    %622 = vmatpush1.msra.mxu0 %v604
    %623 = vmatprep.subr.mxu0 0.0
    %624 = vmatpush1.msra.mxu0 0.0
    %625 = vmatprep.subr.mxu0 0.0
    %626 = vmatpush1.msra.mxu0 0.0
    %627 = vmatprep.subr.mxu0 0.0
    %628 = vmatpush1.msra.mxu0 0.0
    %629 = vmatprep.subr.mxu0 0.0
    %630 = vmatpush1.msra.mxu0 0.0
    %631 = vmatprep.subr.mxu0 0.0
    %632 = vmatpush1.msra.mxu0 0.0
    %633 = vmatprep.subr.mxu0 0.0
    %634 = vmatpush1.msra.mxu0 0.0
    %635 = vmatprep.subr.mxu0 0.0
    %636 = vmatpush1.msra.mxu0 0.0
    %637 = vmatprep.subr.mxu0 0.0
    %638 = vmatpush1.msra.mxu0 0.0
    %639 = vmatprep.subr.mxu0 0.0
    %640 = vmatpush1.msra.mxu0 0.0
    %641 = vmatprep.subr.mxu0 0.0
    %642 = vmatpush1.msra.mxu0 0.0
    %643 = vmatprep.subr.mxu0 0.0
    %644 = vmatpush1.msra.mxu0 0.0
    %645 = vmatprep.subr.mxu0 0.0
    %646 = vmatpush1.msra.mxu0 0.0
    %647 = vmatprep.subr.mxu0 0.0
    %648 = vmatpush1.msra.mxu0 0.0
    %649 = vmatprep.subr.mxu0 0.0
    %650 = vmatpush1.msra.mxu0 0.0
    %651 = vmatprep.subr.mxu0 0.0
    %652 = vmatpush1.msra.mxu0 0.0
    %653 = vmatprep.subr.mxu0 0.0
    %654 = vmatpush1.msra.mxu0 0.0
    %655 = vmatprep.subr.mxu0 0.0
    %656 = vmatpush1.msra.mxu0 0.0
    %657 = vmatprep.subr.mxu0 0.0
    %658 = vmatpush1.msra.mxu0 0.0
    %659 = vmatprep.subr.mxu0 0.0
    %660 = vmatpush1.msra.mxu0 0.0
    %661 = vmatprep.subr.mxu0 0.0
    %662 = vmatpush1.msra.mxu0 0.0
    %663 = vmatprep.subr.mxu0 0.0
    %664 = vmatpush1.msra.mxu0 0.0
    %665 = vmatprep.subr.mxu0 0.0
    %666 = vmatpush1.msra.mxu0 0.0
    %667 = vmatprep.subr.mxu0 0.0
    %668 = vmatpush1.msra.mxu0 0.0
    %669 = vmatprep.subr.mxu0 0.0
    %670 = vmatpush1.msra.mxu0 0.0
    %671 = vmatprep.subr.mxu0 0.0
    %672 = vmatpush1.msra.mxu0 0.0
    %673 = vmatprep.subr.mxu0 0.0
    %674 = vmatpush1.msra.mxu0 0.0
    %675 = vmatprep.subr.mxu0 0.0
    %676 = vmatpush1.msra.mxu0 0.0
    %677 = vmatprep.subr.mxu0 0.0
    %678 = vmatpush1.msra.mxu0 0.0
    %679 = vmatprep.mubr.f32.mxu0 0.0
    %680 = vmatmul.mubr.f32.gmra.mrb[0].mxu0 %v613
    %v681 = vpop.f32.mrb[0].mxu0
    %v682 = vadd.f32 %v610, %v681
    %v683 = vpop.f32.mrb[0].mxu0
    %684 = vdwg.mxu0
    %v685 = vmax.f32 %v682, 0.0
    %v686 = vld [vmem:[%s14] sm:$0xff]
    %v687 = vld [vmem:[%s14 + $0x8] sm:$0xff]
    %v688 = vld [vmem:[%s14 + $0x10] sm:$0xff]
    %v689 = vld [vmem:[%s14 + $0x18] sm:$0xff]
    %v690 = vld [vmem:[#allocation3] sm:$0x1]
    %v692 = vlaneseq
    %v693 = vshrl.u32 %v692, 7
    %v694 = vsub.s32 0, %v693
    %v695 = vrot.slane %v690, %v694
    %v698 = vsel %vm288, %v685, 0
    %700 = vmatprep.subr.mxu0 0.0
    %701 = vmatpush1.msra.mxu0 %v686
    %702 = vmatprep.subr.mxu0 0.0
    %703 = vmatpush1.msra.mxu0 %v687
    %704 = vmatprep.subr.mxu0 0.0
    %705 = vmatpush1.msra.mxu0 %v688
    %706 = vmatprep.subr.mxu0 0.0
    %707 = vmatpush1.msra.mxu0 %v689
    %708 = vmatprep.subr.mxu0 0.0
    %709 = vmatpush1.msra.mxu0 0.0
    %710 = vmatprep.subr.mxu0 0.0
    %711 = vmatpush1.msra.mxu0 0.0
    %712 = vmatprep.subr.mxu0 0.0
    %713 = vmatpush1.msra.mxu0 0.0
    %714 = vmatprep.subr.mxu0 0.0
    %715 = vmatpush1.msra.mxu0 0.0
    %716 = vmatprep.subr.mxu0 0.0
    %717 = vmatpush1.msra.mxu0 0.0
    %718 = vmatprep.subr.mxu0 0.0
    %719 = vmatpush1.msra.mxu0 0.0
    %720 = vmatprep.subr.mxu0 0.0
    %721 = vmatpush1.msra.mxu0 0.0
    %722 = vmatprep.subr.mxu0 0.0
    %723 = vmatpush1.msra.mxu0 0.0
    %724 = vmatprep.subr.mxu0 0.0
    %725 = vmatpush1.msra.mxu0 0.0
    %726 = vmatprep.subr.mxu0 0.0
    %727 = vmatpush1.msra.mxu0 0.0
    %728 = vmatprep.subr.mxu0 0.0
    %729 = vmatpush1.msra.mxu0 0.0
    %730 = vmatprep.subr.mxu0 0.0
    %731 = vmatpush1.msra.mxu0 0.0
    %732 = vmatprep.subr.mxu0 0.0
    %733 = vmatpush1.msra.mxu0 0.0
    %734 = vmatprep.subr.mxu0 0.0
    %735 = vmatpush1.msra.mxu0 0.0
    %736 = vmatprep.subr.mxu0 0.0
    %737 = vmatpush1.msra.mxu0 0.0
    %738 = vmatprep.subr.mxu0 0.0
    %739 = vmatpush1.msra.mxu0 0.0
    %740 = vmatprep.subr.mxu0 0.0
    %741 = vmatpush1.msra.mxu0 0.0
    %742 = vmatprep.subr.mxu0 0.0
    %743 = vmatpush1.msra.mxu0 0.0
    %744 = vmatprep.subr.mxu0 0.0
    %745 = vmatpush1.msra.mxu0 0.0
    %746 = vmatprep.subr.mxu0 0.0
    %747 = vmatpush1.msra.mxu0 0.0
    %748 = vmatprep.subr.mxu0 0.0
    %749 = vmatpush1.msra.mxu0 0.0
    %750 = vmatprep.subr.mxu0 0.0
    %751 = vmatpush1.msra.mxu0 0.0
    %752 = vmatprep.subr.mxu0 0.0
    %753 = vmatpush1.msra.mxu0 0.0
    %754 = vmatprep.subr.mxu0 0.0
    %755 = vmatpush1.msra.mxu0 0.0
    %756 = vmatprep.subr.mxu0 0.0
    %757 = vmatpush1.msra.mxu0 0.0
    %758 = vmatprep.subr.mxu0 0.0
    %759 = vmatpush1.msra.mxu0 0.0
    %760 = vmatprep.subr.mxu0 0.0
    %761 = vmatpush1.msra.mxu0 0.0
    %762 = vmatprep.subr.mxu0 0.0
    %763 = vmatpush1.msra.mxu0 0.0
    %764 = vmatprep.mubr.f32.mxu0 0.0
    %765 = vmatmul.mubr.f32.gmra.mrb[0].mxu0 %v698
    %v766 = vpop.f32.mrb[0].mxu0
    %v767 = vadd.f32 %v695, %v766
    %v768 = vpop.f32.mrb[0].mxu0
    %769 = vdwg.mxu0
    %771 = vrot.lane.b32.xlu0 %v767, 1
    %v772 = vpop.permute.xlu0 %771
    %vm774 = vcmask 11272
    %775 = vst.msk [vmem:[%s16] sm:$0xf] %vm774, %v772
    // Predicated region
    $region86: #{tpu_custom_call.1} parent=1 // pred_check
      _
    $region87: #{tpu_custom_call.1} parent=1 // pred_check_branch
      %777 = sbr.rel (0) target = $region89
    $region88: #{tpu_custom_call.1} parent=1 // pred_region
      _
    $region89: #{tpu_custom_call.1} parent=1 // pred_fallthru
      _
    // Predicated region
    $region90: #{tpu_custom_call.1} parent=1 // pred_check
      _
    $region91: #{tpu_custom_call.1} parent=1 // pred_check_branch
      %779 = sbr.rel (0) target = $region93
    $region92: #{tpu_custom_call.1} parent=1 // pred_region
      _
    $region93: #{tpu_custom_call.1} parent=1 // pred_fallthru
      _
    %780 = vsyncpa [#allocation5], 1
    %781 = vsyncpa [#allocation7], 1
    %782 = vsyncpa [#allocation10], 1

</llo_original>
